<compile_context>
chip_gen: v7x
topology: tpu7x:2x2x1
jax: 0.10.0
libtpu: 0.0.40
codegen_flags: <defaults>
</compile_context>

<pallas_src>
import functools

import jax
import jax.numpy as jnp
import numpy as np
from jax.experimental import pallas as pl
from jax.experimental.pallas import tpu as pltpu

IGNORE_INDEX = -100


# --------------------------- tile / VMEM budgeting ---------------------------
def _budget(n_rows, V, itemsize, n_stream):
    """Rows per block: (n_stream inputs x 2 pipeline buffers x block) + ~6 live
    (TR,V) f32 element-wise intermediates <= ~70% of the VMEM limit.  TR is
    rounded to the dtype sublane pack (8 f32 / 16 bf16 / 32 int8)."""
    pack = max(8, 32 // max(1, itemsize))
    try:
        cap = int(pltpu.get_tpu_info().vmem_capacity_bytes)
    except Exception:
        cap = 64 * 1024 * 1024                        # v7x-conservative fallback
    # 96 MiB on 128 MiB parts (v5e/v6e), 48 MiB on 64 MiB parts (v7x).
    vmem_limit = int(min(cap - (16 << 20), 96 << 20))
    per_row = V * (2 * n_stream * itemsize + 6 * 4)
    rows = (int(vmem_limit * 0.7) // max(1, per_row)) // pack * pack
    rows = max(pack, min(rows, 1024))                 # gains flatten out past ~1k rows
    tr = n_rows if rows >= n_rows else rows
    return tr, vmem_limit


# -------------------------------- kernels ------------------------------------
def _lm_kernel(lbl_ref, s_ref, out_ref, *, n_rows):
    """Cross-entropy partial sums for one row tile.  Labels are pre-shifted, so
    CE validity is simply (label != IGNORE) & in-bounds."""
    rt = pl.program_id(0)
    tr, V = s_ref.shape
    row = rt * tr + jax.lax.broadcasted_iota(jnp.int32, (tr, 1), 0)
    in_bounds = row < n_rows                          # excludes OOB partial-block rows
    lbl = lbl_ref[...]                                # (TR, 1) int32

    x = s_ref[...].astype(jnp.float32)                # (TR, V)
    m = jnp.max(x, axis=-1, keepdims=True)
    y = x - m
    z = jnp.sum(jnp.exp(y), axis=-1, keepdims=True)
    iota_v = jax.lax.broadcasted_iota(jnp.int32, (tr, V), 1)
    picked_y = jnp.sum(jnp.where(iota_v == lbl, y, 0.0), axis=-1, keepdims=True)
    ce_row = jnp.log(z) - picked_y                    # == logsumexp(x) - x[label]
    ce_valid = in_bounds & (lbl != IGNORE_INDEX)
    ce_sum = jnp.sum(jnp.where(ce_valid, ce_row, 0.0))
    n_valid = jnp.sum(ce_valid.astype(jnp.float32))

    lane = jax.lax.broadcasted_iota(jnp.int32, out_ref.shape, 2)
    out_ref[...] = (jnp.where(lane == 0, ce_sum, 0.0)
                    + jnp.where(lane == 1, n_valid, 0.0))


def _lm_kd_kernel(lbl_ref, kdm_ref, s_ref, t_ref, out_ref, *, n_rows, inv_t):
    """Fused CE + KL(teacher || student) partial sums for one row tile."""
    rt = pl.program_id(0)
    tr, V = s_ref.shape
    row = rt * tr + jax.lax.broadcasted_iota(jnp.int32, (tr, 1), 0)
    in_bounds = row < n_rows
    lbl = lbl_ref[...]                                # (TR, 1) int32

    # ---- cross-entropy (student read once, shared with KD) ----
    x = s_ref[...].astype(jnp.float32)
    m = jnp.max(x, axis=-1, keepdims=True)
    y = x - m
    z = jnp.sum(jnp.exp(y), axis=-1, keepdims=True)
    iota_v = jax.lax.broadcasted_iota(jnp.int32, (tr, V), 1)
    picked_y = jnp.sum(jnp.where(iota_v == lbl, y, 0.0), axis=-1, keepdims=True)
    ce_row = jnp.log(z) - picked_y
    ce_valid = in_bounds & (lbl != IGNORE_INDEX)
    ce_sum = jnp.sum(jnp.where(ce_valid, ce_row, 0.0))
    n_valid = jnp.sum(ce_valid.astype(jnp.float32))

    # ---- distillation: reuse the CE max for the tempered student softmax ----
    ys = y * inv_t                                    # (x - m) / T
    s_z = jnp.sum(jnp.exp(ys), axis=-1, keepdims=True)
    t = t_ref[...].astype(jnp.float32)
    t_t = t * inv_t
    t_m = jnp.max(t_t, axis=-1, keepdims=True)
    tm_sub = t_t - t_m
    e_t = jnp.exp(tm_sub)
    t_z = jnp.sum(e_t, axis=-1, keepdims=True)
    # sum_v softmax(t/T) * (log_softmax(t/T) - log_softmax(x/T)), 1/t_z factored out:
    num = jnp.sum(e_t * (tm_sub - ys), axis=-1, keepdims=True)
    kd_row = num / t_z + jnp.log(s_z) - jnp.log(t_z)
    kd_ok = in_bounds & (kdm_ref[...] > 0)
    kd_sum = jnp.sum(jnp.where(kd_ok, kd_row, 0.0))

    lane = jax.lax.broadcasted_iota(jnp.int32, out_ref.shape, 2)
    out_ref[...] = (jnp.where(lane == 0, ce_sum, 0.0)
                    + jnp.where(lane == 1, n_valid, 0.0)
                    + jnp.where(lane == 2, kd_sum, 0.0))


def _gate_kernel(g_ref, out_ref, *, lower, upper, eps, inv_n):
    """Per-layer load-balance and (negative mean) entropy losses."""
    g = g_ref[...].astype(jnp.float32)                # (1, B, L)
    mean_g = jnp.sum(g) * inv_n
    lb = jnp.maximum(lower - mean_g, 0.0) + jnp.maximum(mean_g - upper, 0.0)
    p = jnp.clip(g, eps, 1.0 - eps)
    ent = -(p * jnp.log(p) + (1.0 - p) * jnp.log(1.0 - p))
    neg_ent_mean = -jnp.sum(ent) * inv_n
    lane = jax.lax.broadcasted_iota(jnp.int32, out_ref.shape, 2)
    out_ref[...] = (jnp.where(lane == 0, lb, 0.0)
                    + jnp.where(lane == 1, neg_ent_mean, 0.0))


# -------------------------------- wrappers ------------------------------------
def _lm_sums(logits, shift_labels):
    B, L, V = logits.shape
    n_rows = B * L
    s2 = logits.reshape(n_rows, V)                    # free row-major reshape
    lbl2 = shift_labels.reshape(n_rows, 1)
    tr, vmem_limit = _budget(n_rows, V, jnp.dtype(logits.dtype).itemsize, n_stream=1)
    n_rt = pl.cdiv(n_rows, tr)
    out = pl.pallas_call(
        functools.partial(_lm_kernel, n_rows=n_rows),
        out_shape=jax.ShapeDtypeStruct((n_rt, 1, 128), jnp.float32),
        grid=(n_rt,),
        in_specs=[
            pl.BlockSpec((tr, 1), lambda r: (r, 0)),
            pl.BlockSpec((tr, V), lambda r: (r, 0)),
        ],
        out_specs=pl.BlockSpec((1, 1, 128), lambda r: (r, 0, 0)),
        compiler_params=pltpu.CompilerParams(
            dimension_semantics=("parallel",),
            vmem_limit_bytes=vmem_limit),
    )(lbl2, s2)
    sums = jnp.sum(out[:, 0, :2], axis=0)
    return sums[0], sums[1]


def _lm_kd_sums(logits, shift_labels, kd_mask, teacher_logits, temperature):
    B, L, V = logits.shape
    n_rows = B * L
    s2 = logits.reshape(n_rows, V)
    t2 = teacher_logits.reshape(n_rows, V)
    lbl2 = shift_labels.reshape(n_rows, 1)
    kdm2 = kd_mask.reshape(n_rows, 1)
    itemsize = max(jnp.dtype(logits.dtype).itemsize,
                   jnp.dtype(teacher_logits.dtype).itemsize)
    tr, vmem_limit = _budget(n_rows, V, itemsize, n_stream=2)
    n_rt = pl.cdiv(n_rows, tr)
    kernel = functools.partial(_lm_kd_kernel, n_rows=n_rows,
                               inv_t=float(1.0 / temperature))
    out = pl.pallas_call(
        kernel,
        out_shape=jax.ShapeDtypeStruct((n_rt, 1, 128), jnp.float32),
        grid=(n_rt,),
        in_specs=[
            pl.BlockSpec((tr, 1), lambda r: (r, 0)),
            pl.BlockSpec((tr, 1), lambda r: (r, 0)),
            pl.BlockSpec((tr, V), lambda r: (r, 0)),
            pl.BlockSpec((tr, V), lambda r: (r, 0)),
        ],
        out_specs=pl.BlockSpec((1, 1, 128), lambda r: (r, 0, 0)),
        compiler_params=pltpu.CompilerParams(
            dimension_semantics=("parallel",),
            vmem_limit_bytes=vmem_limit),
    )(lbl2, kdm2, s2, t2)
    sums = jnp.sum(out[:, 0, :3], axis=0)
    return sums[0], sums[1], sums[2]


def gate_losses(gate_weights, *, gate_target, gate_margin):
    """Sum over layers of load-balance loss and negative mean entropy.
    One layer per grid step (parallel); avoids a single giant VMEM block."""
    NL, B, L = gate_weights.shape
    kernel = functools.partial(
        _gate_kernel,
        lower=float(gate_target - gate_margin), upper=float(gate_target + gate_margin),
        eps=1e-6, inv_n=float(1.0 / (B * L)))
    out = pl.pallas_call(
        kernel,
        out_shape=jax.ShapeDtypeStruct((NL, 1, 128), jnp.float32),
        grid=(NL,),
        in_specs=[pl.BlockSpec((1, B, L), lambda i: (i, 0, 0))],
        out_specs=pl.BlockSpec((1, 1, 128), lambda i: (i, 0, 0)),
        compiler_params=pltpu.CompilerParams(dimension_semantics=("parallel",)),
    )(gate_weights)
    sums = jnp.sum(out[:, 0, :2], axis=0)
    return sums[0], sums[1]


# ----------------------------- full loss module ------------------------------
def hybrid_model_loss(logits, labels, gate_weights=None, teacher_logits=None, *,
                      load_balance_coeff=0.1, entropy_reg_coeff=1e-4,
                      distill_coeff=0.0, distill_temperature=4.0,
                      gate_target=0.5, gate_margin=0.1):
    B, L, V = logits.shape
    # shifted labels (tiny [B, L] tensor); last position set to IGNORE_INDEX.
    shift_labels = jnp.concatenate(
        [labels[:, 1:].astype(jnp.int32),
         jnp.full((B, 1), IGNORE_INDEX, dtype=jnp.int32)], axis=1)

    losses = {}
    use_kd = (teacher_logits is not None) and (distill_coeff > 0)
    if use_kd:
        # KD applies to all positions < L-1 regardless of label ignore mask.
        kd_mask = jnp.concatenate(
            [jnp.ones((B, L - 1), jnp.int32), jnp.zeros((B, 1), jnp.int32)], axis=1)
        ce_sum, n_valid, kd_sum = _lm_kd_sums(logits, shift_labels, kd_mask,
                                              teacher_logits, distill_temperature)
        kd = (kd_sum / B) * (distill_temperature ** 2)  # F.kl_div batchmean on [B,L-1,V]
    else:
        ce_sum, n_valid = _lm_sums(logits, shift_labels)
        kd = None

    lm = ce_sum / n_valid     # NaN if every label is IGNORE_INDEX (matches PyTorch)
    losses["lm_loss"] = lm
    total = lm

    if gate_weights is not None:
        lb, ent = gate_losses(gate_weights, gate_target=gate_target,
                              gate_margin=gate_margin)
        losses["load_balance_loss"] = lb
        losses["entropy_loss"] = ent
        total = total + load_balance_coeff * lb + entropy_reg_coeff * ent
    else:
        losses["load_balance_loss"] = jnp.float32(0.0)
        losses["entropy_loss"] = jnp.float32(0.0)

    if use_kd:
        losses["distill_loss"] = kd
        total = total + distill_coeff * kd

    losses["total_loss"] = total
    return losses
    # TODO(synk): Python-side logging / debug_step bookkeeping has no kernel equivalent.


# ------------------------------ pure-JAX reference ---------------------------
def _reference(logits, labels, gate_weights, teacher_logits, *, lb_c, ent_c,
               kd_c, T, gt, gm):
    B, L, V = logits.shape
    sl = logits[:, :-1, :].reshape(-1, V)
    lb = labels[:, 1:].reshape(-1)
    valid = (lb != IGNORE_INDEX)
    lse = jax.scipy.special.logsumexp(sl, axis=-1)
    picked = jnp.take_along_axis(sl, jnp.clip(lb, 0, None)[:, None], axis=-1)[:, 0]
    lm = jnp.sum((lse - picked) * valid) / jnp.sum(valid)

    lbsum, entsum = 0.0, 0.0
    for k in range(gate_weights.shape[0]):
        g = gate_weights[k]
        m = g.mean()
        lbsum += jnp.maximum((gt - gm) - m, 0.0) + jnp.maximum(m - (gt + gm), 0.0)
        p = jnp.clip(g, 1e-6, 1 - 1e-6)
        entsum += -(-(p * jnp.log(p) + (1 - p) * jnp.log(1 - p))).mean()

    s = sl / T
    t = teacher_logits[:, :-1, :].reshape(-1, V) / T
    s_logp = jax.nn.log_softmax(s, axis=-1)
    t_logp = jax.nn.log_softmax(t, axis=-1)
    t_p = jnp.exp(t_logp)
    kd = jnp.sum(t_p * (t_logp - s_logp)) / B * T ** 2

    total = lm + lb_c * lbsum + ent_c * entsum + kd_c * kd
    return dict(lm_loss=lm, load_balance_loss=lbsum, entropy_loss=entsum,
                distill_loss=kd, total_loss=total)


if __name__ == "__main__":
    B, L, V, NL = 2, 9, 128, 3
    key = jax.random.PRNGKey(0)
    k1, k2, k3, k4 = jax.random.split(key, 4)

    logits = jax.random.normal(k1, (B, L, V), dtype=jnp.float32)
    labels = jax.random.randint(k2, (B, L), 0, V, dtype=jnp.int32)
    labels = labels.at[0, 3].set(IGNORE_INDEX)          # exercise ignore_index
    gate_weights = jax.random.uniform(k3, (NL, B, L), dtype=jnp.float32)
    teacher_logits = jax.random.normal(k4, (B, L, V), dtype=jnp.float32)

    cfg = dict(load_balance_coeff=0.1, entropy_reg_coeff=1e-4,
               distill_coeff=0.5, distill_temperature=4.0,
               gate_target=0.5, gate_margin=0.1)

    ref = _reference(logits, labels, gate_weights, teacher_logits,
                     lb_c=cfg["load_balance_coeff"], ent_c=cfg["entropy_reg_coeff"],
                     kd_c=cfg["distill_coeff"], T=cfg["distill_temperature"],
                     gt=cfg["gate_target"], gm=cfg["gate_margin"])

    # Full path (CE + gates + KD).
    run = jax.jit(functools.partial(hybrid_model_loss, **cfg))
    losses = run(logits, labels, gate_weights, teacher_logits)
    losses = jax.tree_util.tree_map(jax.block_until_ready, losses)
    for name in ("lm_loss", "load_balance_loss", "entropy_loss",
                 "distill_loss", "total_loss"):
        np.testing.assert_allclose(np.array(losses[name]), np.array(ref[name]),
                                   rtol=1e-4, atol=1e-5)

    # CE-only path (no teacher / no distillation).
    cfg2 = dict(cfg, distill_coeff=0.0)
    run2 = jax.jit(functools.partial(hybrid_model_loss, **cfg2))
    losses2 = run2(logits, labels, gate_weights, None)
    losses2 = jax.tree_util.tree_map(jax.block_until_ready, losses2)
    np.testing.assert_allclose(np.array(losses2["lm_loss"]), np.array(ref["lm_loss"]),
                               rtol=1e-4, atol=1e-5)
    expected_total2 = (ref["lm_loss"] + cfg["load_balance_coeff"] * ref["load_balance_loss"]
                       + cfg["entropy_reg_coeff"] * ref["entropy_loss"])
    np.testing.assert_allclose(np.array(losses2["total_loss"]), np.array(expected_total2),
                               rtol=1e-4, atol=1e-5)

    print("KERNEL_OK")
</pallas_src>

<mosaic_0001>
module attributes {stable_mosaic.version = 11 : i64} {
  func.func @_gate_kernel(%arg0: i32, %arg1: memref<1x2x9xf32, #tpu.memory_space<vmem>>, %arg2: memref<1x1x128xf32, #tpu.memory_space<vmem>>) attributes {dimension_semantics = [#tpu.dimension_semantics<parallel>], iteration_bounds = array<i64: 3>, scalar_prefetch = 0 : i64, scratch_operands = 0 : i64, tpu.core_type = #tpu.core_type<tc>, window_params = [{transform_indices = @transform_0, window_bounds = array<i64: 1, 2, 9>}, {transform_indices = @transform_1, window_bounds = array<i64: 1, 1, 128>}]} {
    %c0 = arith.constant 0 : index
    %c0_0 = arith.constant 0 : index
    %c0_1 = arith.constant 0 : index
    %0 = vector.load %arg1[%c0, %c0_0, %c0_1] : memref<1x2x9xf32, #tpu.memory_space<vmem>>, vector<1x2x9xf32>
    %1 = vector.shape_cast %0 : vector<1x2x9xf32> to vector<1x1x2x9xf32>
    %cst = arith.constant dense<0.000000e+00> : vector<1xf32>
    %2 = vector.multi_reduction <add>, %1, %cst [1, 2, 3] : vector<1x1x2x9xf32> to vector<1xf32>
    %3 = vector.shape_cast %2 : vector<1xf32> to vector<1x1x1x1xf32>
    %4 = vector.extract %3[0, 0, 0, 0] : f32 from vector<1x1x1x1xf32>
    %cst_2 = arith.constant 0.055555556 : f32
    %5 = arith.mulf %4, %cst_2 : f32
    %cst_3 = arith.constant 4.000000e-01 : f32
    %6 = arith.subf %cst_3, %5 : f32
    %cst_4 = arith.constant 0.000000e+00 : f32
    %7 = arith.maximumf %6, %cst_4 : f32
    %cst_5 = arith.constant 6.000000e-01 : f32
    %8 = arith.subf %5, %cst_5 : f32
    %cst_6 = arith.constant 0.000000e+00 : f32
    %9 = arith.maximumf %8, %cst_6 : f32
    %10 = arith.addf %7, %9 : f32
    %cst_7 = arith.constant 9.99999997E-7 : f32
    %cst_8 = arith.constant 0.999998986 : f32
    %11 = vector.broadcast %cst_7 : f32 to vector<1x2x9xf32>
    %12 = arith.maximumf %11, %0 : vector<1x2x9xf32>
    %13 = vector.broadcast %cst_8 : f32 to vector<1x2x9xf32>
    %14 = arith.minimumf %13, %12 : vector<1x2x9xf32>
    %15 = math.log %14 : vector<1x2x9xf32>
    %16 = arith.mulf %14, %15 : vector<1x2x9xf32>
    %cst_9 = arith.constant 1.000000e+00 : f32
    %17 = vector.broadcast %cst_9 : f32 to vector<1x2x9xf32>
    %18 = arith.subf %17, %14 : vector<1x2x9xf32>
    %cst_10 = arith.constant 1.000000e+00 : f32
    %19 = vector.broadcast %cst_10 : f32 to vector<1x2x9xf32>
    %20 = arith.subf %19, %14 : vector<1x2x9xf32>
    %21 = math.log %20 : vector<1x2x9xf32>
    %22 = arith.mulf %18, %21 : vector<1x2x9xf32>
    %23 = arith.addf %16, %22 : vector<1x2x9xf32>
    %cst_11 = arith.constant 0.000000e+00 : f32
    %24 = vector.broadcast %cst_11 : f32 to vector<1x2x9xf32>
    %25 = arith.subf %24, %23 : vector<1x2x9xf32>
    %26 = vector.shape_cast %25 : vector<1x2x9xf32> to vector<1x1x2x9xf32>
    %cst_12 = arith.constant dense<0.000000e+00> : vector<1xf32>
    %27 = vector.multi_reduction <add>, %26, %cst_12 [1, 2, 3] : vector<1x1x2x9xf32> to vector<1xf32>
    %28 = vector.shape_cast %27 : vector<1xf32> to vector<1x1x1x1xf32>
    %29 = vector.extract %28[0, 0, 0, 0] : f32 from vector<1x1x1x1xf32>
    %cst_13 = arith.constant 0.000000e+00 : f32
    %30 = arith.subf %cst_13, %29 : f32
    %cst_14 = arith.constant 0.055555556 : f32
    %31 = arith.mulf %30, %cst_14 : f32
    %32 = tpu.iota {dimensions = array<i32: 2>} : vector<1x1x128xi32>
    %c0_i32 = arith.constant 0 : i32
    %33 = vector.broadcast %c0_i32 : i32 to vector<1x1x128xi32>
    %34 = arith.cmpi eq, %32, %33 : vector<1x1x128xi32>
    %cst_15 = arith.constant 0.000000e+00 : f32
    %35 = vector.broadcast %10 : f32 to vector<1x1x128xf32>
    %36 = vector.broadcast %cst_15 : f32 to vector<1x1x128xf32>
    %37 = arith.select %34, %35, %36 : vector<1x1x128xi1>, vector<1x1x128xf32>
    %c1_i32 = arith.constant 1 : i32
    %38 = vector.broadcast %c1_i32 : i32 to vector<1x1x128xi32>
    %39 = arith.cmpi eq, %32, %38 : vector<1x1x128xi32>
    %cst_16 = arith.constant 0.000000e+00 : f32
    %40 = vector.broadcast %31 : f32 to vector<1x1x128xf32>
    %41 = vector.broadcast %cst_16 : f32 to vector<1x1x128xf32>
    %42 = arith.select %39, %40, %41 : vector<1x1x128xi1>, vector<1x1x128xf32>
    %43 = arith.addf %37, %42 : vector<1x1x128xf32>
    %c0_17 = arith.constant 0 : index
    %c0_18 = arith.constant 0 : index
    %c0_19 = arith.constant 0 : index
    %44 = vector.load %arg2[%c0_17, %c0_18, %c0_19] : memref<1x1x128xf32, #tpu.memory_space<vmem>>, vector<1x1x128xf32>
    tpu.vector_store %arg2[%c0_17, %c0_18, %c0_19], %43 {strides = array<i32>} : memref<1x1x128xf32, #tpu.memory_space<vmem>>, vector<1x1x128xf32>,
    return
  }
  func.func @transform_0(%arg0: i32) -> (i32, i32, i32) {
    %c0_i32 = arith.constant 0 : i32
    %c0_i32_0 = arith.constant 0 : i32
    %c0_i32_1 = arith.constant 0 : i32
    return %arg0, %c0_i32, %c0_i32_0 : i32, i32, i32
  }
  func.func @transform_1(%arg0: i32) -> (i32, i32, i32) {
    %c0_i32 = arith.constant 0 : i32
    %c0_i32_0 = arith.constant 0 : i32
    %c0_i32_1 = arith.constant 0 : i32
    return %arg0, %c0_i32, %c0_i32_0 : i32, i32, i32
  }
}

module attributes {stable_mosaic.version = 11 : i64} {
  func.func @_lm_kd_kernel(%arg0: i32, %arg1: memref<18x1xi32, #tpu.memory_space<vmem>>, %arg2: memref<18x1xi32, #tpu.memory_space<vmem>>, %arg3: memref<18x128xf32, #tpu.memory_space<vmem>>, %arg4: memref<18x128xf32, #tpu.memory_space<vmem>>, %arg5: memref<1x1x128xf32, #tpu.memory_space<vmem>>) attributes {dimension_semantics = [#tpu.dimension_semantics<parallel>], iteration_bounds = array<i64: 1>, scalar_prefetch = 0 : i64, scratch_operands = 0 : i64, tpu.core_type = #tpu.core_type<tc>, window_params = [{transform_indices = @transform_0, window_bounds = array<i64: 18, 1>}, {transform_indices = @transform_1, window_bounds = array<i64: 18, 1>}, {transform_indices = @transform_2, window_bounds = array<i64: 18, 128>}, {transform_indices = @transform_3, window_bounds = array<i64: 18, 128>}, {transform_indices = @transform_4, window_bounds = array<i64: 1, 1, 128>}]} {
    %c18_i32 = arith.constant 18 : i32
    %0 = arith.muli %arg0, %c18_i32 : i32
    %1 = tpu.iota {dimensions = array<i32: 0>} : vector<18x1xi32>
    %2 = vector.broadcast %0 : i32 to vector<18x1xi32>
    %3 = arith.addi %2, %1 : vector<18x1xi32>
    %c18_i32_0 = arith.constant 18 : i32
    %4 = vector.broadcast %c18_i32_0 : i32 to vector<18x1xi32>
    %5 = arith.cmpi slt, %3, %4 : vector<18x1xi32>
    %c0 = arith.constant 0 : index
    %c0_1 = arith.constant 0 : index
    %6 = vector.load %arg1[%c0, %c0_1] : memref<18x1xi32, #tpu.memory_space<vmem>>, vector<18x1xi32>
    %c0_2 = arith.constant 0 : index
    %c0_3 = arith.constant 0 : index
    %7 = vector.load %arg3[%c0_2, %c0_3] : memref<18x128xf32, #tpu.memory_space<vmem>>, vector<18x128xf32>
    %cst = arith.constant dense<0xFF800000> : vector<18xf32>
    %8 = vector.multi_reduction <maximumf>, %7, %cst [1] : vector<18x128xf32> to vector<18xf32>
    %9 = vector.shape_cast %8 : vector<18xf32> to vector<18x1xf32>
    %10 = vector.broadcast %9 : vector<18x1xf32> to vector<18x128xf32>
    %11 = arith.subf %7, %10 : vector<18x128xf32>
    %12 = math.exp %11 : vector<18x128xf32>
    %cst_4 = arith.constant dense<0.000000e+00> : vector<18xf32>
    %13 = vector.multi_reduction <add>, %12, %cst_4 [1] : vector<18x128xf32> to vector<18xf32>
    %14 = vector.shape_cast %13 : vector<18xf32> to vector<18x1xf32>
    %15 = tpu.iota {dimensions = array<i32: 1>} : vector<18x128xi32>
    %16 = vector.broadcast %6 : vector<18x1xi32> to vector<18x128xi32>
    %17 = arith.cmpi eq, %15, %16 : vector<18x128xi32>
    %cst_5 = arith.constant 0.000000e+00 : f32
    %18 = vector.broadcast %cst_5 : f32 to vector<18x128xf32>
    %19 = arith.select %17, %11, %18 : vector<18x128xi1>, vector<18x128xf32>
    %cst_6 = arith.constant dense<0.000000e+00> : vector<18xf32>
    %20 = vector.multi_reduction <add>, %19, %cst_6 [1] : vector<18x128xf32> to vector<18xf32>
    %21 = vector.shape_cast %20 : vector<18xf32> to vector<18x1xf32>
    %22 = math.log %14 : vector<18x1xf32>
    %23 = arith.subf %22, %21 : vector<18x1xf32>
    %c-100_i32 = arith.constant -100 : i32
    %24 = vector.broadcast %c-100_i32 : i32 to vector<18x1xi32>
    %25 = arith.cmpi ne, %6, %24 : vector<18x1xi32>
    %26 = arith.andi %5, %25 : vector<18x1xi1>
    %cst_7 = arith.constant 0.000000e+00 : f32
    %27 = vector.broadcast %cst_7 : f32 to vector<18x1xf32>
    %28 = arith.select %26, %23, %27 : vector<18x1xi1>, vector<18x1xf32>
    %29 = vector.shape_cast %28 : vector<18x1xf32> to vector<1x18x1xf32>
    %cst_8 = arith.constant dense<0.000000e+00> : vector<1xf32>
    %30 = vector.multi_reduction <add>, %29, %cst_8 [1, 2] : vector<1x18x1xf32> to vector<1xf32>
    %31 = vector.shape_cast %30 : vector<1xf32> to vector<1x1x1xf32>
    %32 = vector.extract %31[0, 0, 0] : f32 from vector<1x1x1xf32>
    %33 = arith.extui %26 : vector<18x1xi1> to vector<18x1xi32>
    %34 = arith.sitofp %33 : vector<18x1xi32> to vector<18x1xf32>
    %35 = vector.shape_cast %34 : vector<18x1xf32> to vector<1x18x1xf32>
    %cst_9 = arith.constant dense<0.000000e+00> : vector<1xf32>
    %36 = vector.multi_reduction <add>, %35, %cst_9 [1, 2] : vector<1x18x1xf32> to vector<1xf32>
    %37 = vector.shape_cast %36 : vector<1xf32> to vector<1x1x1xf32>
    %38 = vector.extract %37[0, 0, 0] : f32 from vector<1x1x1xf32>
    %cst_10 = arith.constant 2.500000e-01 : f32
    %39 = vector.broadcast %cst_10 : f32 to vector<18x128xf32>
    %40 = arith.mulf %11, %39 : vector<18x128xf32>
    %41 = math.exp %40 : vector<18x128xf32>
    %cst_11 = arith.constant dense<0.000000e+00> : vector<18xf32>
    %42 = vector.multi_reduction <add>, %41, %cst_11 [1] : vector<18x128xf32> to vector<18xf32>
    %43 = vector.shape_cast %42 : vector<18xf32> to vector<18x1xf32>
    %c0_12 = arith.constant 0 : index
    %c0_13 = arith.constant 0 : index
    %44 = vector.load %arg4[%c0_12, %c0_13] : memref<18x128xf32, #tpu.memory_space<vmem>>, vector<18x128xf32>
    %cst_14 = arith.constant 2.500000e-01 : f32
    %45 = vector.broadcast %cst_14 : f32 to vector<18x128xf32>
    %46 = arith.mulf %44, %45 : vector<18x128xf32>
    %cst_15 = arith.constant dense<0xFF800000> : vector<18xf32>
    %47 = vector.multi_reduction <maximumf>, %46, %cst_15 [1] : vector<18x128xf32> to vector<18xf32>
    %48 = vector.shape_cast %47 : vector<18xf32> to vector<18x1xf32>
    %49 = vector.broadcast %48 : vector<18x1xf32> to vector<18x128xf32>
    %50 = arith.subf %46, %49 : vector<18x128xf32>
    %51 = math.exp %50 : vector<18x128xf32>
    %cst_16 = arith.constant dense<0.000000e+00> : vector<18xf32>
    %52 = vector.multi_reduction <add>, %51, %cst_16 [1] : vector<18x128xf32> to vector<18xf32>
    %53 = vector.shape_cast %52 : vector<18xf32> to vector<18x1xf32>
    %54 = arith.subf %50, %40 : vector<18x128xf32>
    %55 = arith.mulf %51, %54 : vector<18x128xf32>
    %cst_17 = arith.constant dense<0.000000e+00> : vector<18xf32>
    %56 = vector.multi_reduction <add>, %55, %cst_17 [1] : vector<18x128xf32> to vector<18xf32>
    %57 = vector.shape_cast %56 : vector<18xf32> to vector<18x1xf32>
    %58 = arith.divf %57, %53 : vector<18x1xf32>
    %59 = math.log %43 : vector<18x1xf32>
    %60 = arith.addf %58, %59 : vector<18x1xf32>
    %61 = math.log %53 : vector<18x1xf32>
    %62 = arith.subf %60, %61 : vector<18x1xf32>
    %c0_18 = arith.constant 0 : index
    %c0_19 = arith.constant 0 : index
    %63 = vector.load %arg2[%c0_18, %c0_19] : memref<18x1xi32, #tpu.memory_space<vmem>>, vector<18x1xi32>
    %c0_i32 = arith.constant 0 : i32
    %64 = vector.broadcast %c0_i32 : i32 to vector<18x1xi32>
    %65 = arith.cmpi sgt, %63, %64 : vector<18x1xi32>
    %66 = arith.andi %5, %65 : vector<18x1xi1>
    %cst_20 = arith.constant 0.000000e+00 : f32
    %67 = vector.broadcast %cst_20 : f32 to vector<18x1xf32>
    %68 = arith.select %66, %62, %67 : vector<18x1xi1>, vector<18x1xf32>
    %69 = vector.shape_cast %68 : vector<18x1xf32> to vector<1x18x1xf32>
    %cst_21 = arith.constant dense<0.000000e+00> : vector<1xf32>
    %70 = vector.multi_reduction <add>, %69, %cst_21 [1, 2] : vector<1x18x1xf32> to vector<1xf32>
    %71 = vector.shape_cast %70 : vector<1xf32> to vector<1x1x1xf32>
    %72 = vector.extract %71[0, 0, 0] : f32 from vector<1x1x1xf32>
    %73 = tpu.iota {dimensions = array<i32: 2>} : vector<1x1x128xi32>
    %c0_i32_22 = arith.constant 0 : i32
    %74 = vector.broadcast %c0_i32_22 : i32 to vector<1x1x128xi32>
    %75 = arith.cmpi eq, %73, %74 : vector<1x1x128xi32>
    %cst_23 = arith.constant 0.000000e+00 : f32
    %76 = vector.broadcast %32 : f32 to vector<1x1x128xf32>
    %77 = vector.broadcast %cst_23 : f32 to vector<1x1x128xf32>
    %78 = arith.select %75, %76, %77 : vector<1x1x128xi1>, vector<1x1x128xf32>
    %c1_i32 = arith.constant 1 : i32
    %79 = vector.broadcast %c1_i32 : i32 to vector<1x1x128xi32>
    %80 = arith.cmpi eq, %73, %79 : vector<1x1x128xi32>
    %cst_24 = arith.constant 0.000000e+00 : f32
    %81 = vector.broadcast %38 : f32 to vector<1x1x128xf32>
    %82 = vector.broadcast %cst_24 : f32 to vector<1x1x128xf32>
    %83 = arith.select %80, %81, %82 : vector<1x1x128xi1>, vector<1x1x128xf32>
    %84 = arith.addf %78, %83 : vector<1x1x128xf32>
    %c2_i32 = arith.constant 2 : i32
    %85 = vector.broadcast %c2_i32 : i32 to vector<1x1x128xi32>
    %86 = arith.cmpi eq, %73, %85 : vector<1x1x128xi32>
    %cst_25 = arith.constant 0.000000e+00 : f32
    %87 = vector.broadcast %72 : f32 to vector<1x1x128xf32>
    %88 = vector.broadcast %cst_25 : f32 to vector<1x1x128xf32>
    %89 = arith.select %86, %87, %88 : vector<1x1x128xi1>, vector<1x1x128xf32>
    %90 = arith.addf %84, %89 : vector<1x1x128xf32>
    %c0_26 = arith.constant 0 : index
    %c0_27 = arith.constant 0 : index
    %c0_28 = arith.constant 0 : index
    %91 = vector.load %arg5[%c0_26, %c0_27, %c0_28] : memref<1x1x128xf32, #tpu.memory_space<vmem>>, vector<1x1x128xf32>
    tpu.vector_store %arg5[%c0_26, %c0_27, %c0_28], %90 {strides = array<i32>} : memref<1x1x128xf32, #tpu.memory_space<vmem>>, vector<1x1x128xf32>,
    return
  }
  func.func @transform_0(%arg0: i32) -> (i32, i32) {
    %c0_i32 = arith.constant 0 : i32
    %c0_i32_0 = arith.constant 0 : i32
    return %arg0, %c0_i32 : i32, i32
  }
  func.func @transform_1(%arg0: i32) -> (i32, i32) {
    %c0_i32 = arith.constant 0 : i32
    %c0_i32_0 = arith.constant 0 : i32
    return %arg0, %c0_i32 : i32, i32
  }
  func.func @transform_2(%arg0: i32) -> (i32, i32) {
    %c0_i32 = arith.constant 0 : i32
    %c0_i32_0 = arith.constant 0 : i32
    return %arg0, %c0_i32 : i32, i32
  }
  func.func @transform_3(%arg0: i32) -> (i32, i32) {
    %c0_i32 = arith.constant 0 : i32
    %c0_i32_0 = arith.constant 0 : i32
    return %arg0, %c0_i32 : i32, i32
  }
  func.func @transform_4(%arg0: i32) -> (i32, i32, i32) {
    %c0_i32 = arith.constant 0 : i32
    %c0_i32_0 = arith.constant 0 : i32
    %c0_i32_1 = arith.constant 0 : i32
    return %arg0, %c0_i32, %c0_i32_0 : i32, i32, i32
  }
}

</mosaic_0001>

<llo_original>
// kernel: hybrid_model_loss.3
$region0: #{hybrid_model_loss.3}
  #allocation0 [shape = 'u32[]', space=smem, size = 0x4, offset = 0x4, fixed_abs, tag = 'smem constant byte address 0x4 - core index']
  #allocation1 [shape = 'u32[144,128]{1,0:T(1,128)}', space=vmem, size = 0x12000, scoped, tag = 'internal scratch']
  %s0 = inlined_call_operand.vmem [shape: f32[3,2,9], index: 0, kind: input, shape index: {}]
  %s1 = inlined_call_operand.vmem [shape: f32[3,1,128], index: 1, kind: output, shape index: {}]
  %s2 = sld [smem:[#allocation0]]
  $region37: #{hybrid_model_loss.3} parent=0
    _
  %s4 = ssub.s32 1, %s2
  %s5 = scalar_select 0, %s4, %s2
  loop: start=0, step=1, limit=5
  $region2: #{hybrid_model_loss.3} parent=0 // loop_pre_header
    _
  $region3: #{hybrid_model_loss.3} parent=0 // loop_header
    %s7 = sphi 0, %s11
    %p8 = scmp.ge.s32.totalorder %s7, 5
    %s17 = sphi 0, %s19
    %s20 = sphi 0, %s17
    %s21 = sphi 0, %s20
    %s37 = sphi 0, %s21
    %s43 = sphi 0, %s45
    %s46 = sphi 0, %s43
    %s47 = sphi 0, %s46
    %s63 = sphi 0, %s47
  $region4: #{hybrid_model_loss.3} parent=0 // loop_header_branch
    %10 = sbr.rel (%p8) target = $region8
  $region5: #{hybrid_model_loss.3} parent=0 // loop_body
    %s12 = ssub.s32 %s7, 1
    %s13 = ssub.s32 %s7, 2
    %s14 = sadd.s32 %s7, 1
    %s15 = ssub.s32 %s7, %s14
    %p16 = scmp.eq.s32.totalorder %s15, 0
    %s18 = sadd.s32 %s17, 1
    %s19 = scalar_select %p16, %s17, %s18
    %p22 = pneg %p16
    %p23 = scmp.eq.s32.totalorder %s7, 2
    %p24 = por %p22, %p23
    %p25 = scmp.ne.s32.totalorder %s17, %s20
    %p26 = scmp.eq.s32.totalorder %s7, 0
    %p27 = por %p25, %p26
    %p28 = scmp.ne.s32.totalorder %s17, %s20
    %p29 = scmp.eq.s32.totalorder %s12, 2
    %p30 = por %p28, %p29
    %p31 = scmp.ne.s32.totalorder %s20, %s21
    %p32 = scmp.eq.s32.totalorder %s12, 0
    %p33 = por %p31, %p32
    %p34 = scmp.ne.s32.totalorder %s20, %s21
    %p35 = scmp.eq.s32.totalorder %s13, 2
    %p36 = por %p34, %p35
    %p38 = scmp.ne.s32.totalorder %s21, %s37
    %p39 = scmp.eq.s32.totalorder %s13, 0
    %p40 = por %p38, %p39
    %s41 = ssub.s32 %s7, %s14
    %p42 = scmp.eq.s32.totalorder %s41, 0
    %s44 = sadd.s32 %s43, 1
    %s45 = scalar_select %p42, %s43, %s44
    %p48 = pneg %p42
    %p49 = scmp.eq.s32.totalorder %s7, 2
    %p50 = por %p48, %p49
    %p51 = scmp.ne.s32.totalorder %s43, %s46
    %p52 = scmp.eq.s32.totalorder %s7, 0
    %p53 = por %p51, %p52
    %p54 = scmp.ne.s32.totalorder %s43, %s46
    %p55 = scmp.eq.s32.totalorder %s12, 2
    %p56 = por %p54, %p55
    %p57 = scmp.ne.s32.totalorder %s46, %s47
    %p58 = scmp.eq.s32.totalorder %s12, 0
    %p59 = por %p57, %p58
    %p60 = scmp.ne.s32.totalorder %s46, %s47
    %p61 = scmp.eq.s32.totalorder %s13, 2
    %p62 = por %p60, %p61
    %p64 = scmp.ne.s32.totalorder %s47, %s63
    %p65 = scmp.eq.s32.totalorder %s13, 0
    %p66 = por %p64, %p65
    %p67 = scmp.le.s32.totalorder 1, %s7
    %p68 = scmp.lt.s32.totalorder %s7, 4
    %p69 = pnand %p67, %p68
    %p70 = pneg %p69
    // Predicated region
    $region9: #{hybrid_model_loss.3} parent=5 // pred_check
      _
    $region10: #{hybrid_model_loss.3} parent=5 // pred_check_branch
      %72 = sbr.rel (%p69) target = $region12
    $region11: #{hybrid_model_loss.3} parent=5 // pred_region
      %s73 = ssub.s32 %s7, 1
    $region12: #{hybrid_model_loss.3} parent=5 // pred_fallthru
      _
    %p74 = scmp.lt.s32.totalorder %s7, 3
    // Predicated region
    $region13: #{hybrid_model_loss.3} parent=5 // pred_check
      %p75 = pneg %p74
    $region14: #{hybrid_model_loss.3} parent=5 // pred_check_branch
      %77 = sbr.rel (%p75) target = $region16
    $region15: #{hybrid_model_loss.3} parent=5 // pred_region
      // Predicated region
      $region17: #{hybrid_model_loss.3} parent=15 // pred_check
        %p78 = pneg %p27
      $region18: #{hybrid_model_loss.3} parent=15 // pred_check_branch
        %80 = sbr.rel (%p78) target = $region20
      $region19: #{hybrid_model_loss.3} parent=15 // pred_region
        %p81 = scmp.lt.s32.totalorder %s7, 2
        %s82 = scalar_select %p81, %s7, 2
        %s83 = smul.addr %s82, 2
        %s84 = scalar_lea.vmem %s0, %s83
      $region20: #{hybrid_model_loss.3} parent=15 // pred_fallthru
        _
    $region16: #{hybrid_model_loss.3} parent=5 // pred_fallthru
      _
    %p85 = scmp.le.s32.totalorder 1, %s7
    %p86 = scmp.lt.s32.totalorder %s7, 4
    %p87 = pnand %p85, %p86
    %p88 = pneg %p87
    // Predicated region
    $region21: #{hybrid_model_loss.3} parent=5 // pred_check
      _
    $region22: #{hybrid_model_loss.3} parent=5 // pred_check_branch
      %90 = sbr.rel (%p87) target = $region24
    $region23: #{hybrid_model_loss.3} parent=5 // pred_region
      %s91 = ssub.s32 %s7, 1
      %p92 = scmp.lt.s32.totalorder %s12, 2
      %s93 = scalar_select %p92, %s12, 2
      %s94 = smul.addr %s93, 2
      %s95 = scalar_lea.vmem %s0, %s94
      %p96 = pneg %p33
      %p97 = pneg %p30
      %p98 = pneg %p59
      %p99 = pneg %p56
      %p100 = scmp.lt.s32.totalorder %s12, 2
      %s101 = scalar_select %p100, %s12, 2
      %s102 = scalar_lea.vmem %s1, %s101
      %p103 = scmp.lt.s32.totalorder %s12, 2
      %s104 = scalar_select %p103, %s12, 2
      %s105 = smul.addr %s104, 2
      %s106 = scalar_lea.vmem %s0, %s105
      %p107 = scmp.lt.s32.totalorder %s12, 2
      %s108 = scalar_select %p107, %s12, 2
      %s109 = scalar_lea.vmem %s1, %s108
      %v110 = vld [vmem:[%s106] sm:$0x3]
      %vm111 = vcmask 66560
      %v112 = vsel %vm111, %v110, 0.0
      %113 = vadd.xlane.f32.xlu0 %v112
      %v114 = vpop.xlane.xlu0 %113
      %v115 = vrot.slane %v114, 4
      %v116 = vadd.f32 %v114, %v115
      %v117 = vrot.slane %v116, 2
      %v118 = vadd.f32 %v116, %v117
      %v119 = vrot.slane %v118, 1
      %v120 = vadd.f32 %v118, %v119
      %s121 = vtos %v120
      %s122 = smul.f32 %s121, 0.055555556
      %s123 = ssub.f32 0.4, %s122
      %s124 = smax.f32 %s123, 0.0
      %s125 = ssub.f32 %s122, 0.6
      %s126 = smax.f32 %s125, 0.0
      %s127 = sadd.f32 %s124, %s126
      %v128 = vmax.f32 %v110, 1e-06
      %v129 = vmin.f32 %v128, 0.999999
      %v130 = vlog2.pop %v129
      %v131 = vmul.f32 %v130, 0.6931472
      %v132 = vmul.f32 %v129, %v131
      %v133 = vsub.f32 1.0, %v129
      %v134 = vlog2.pop %v133
      %v135 = vmul.f32 %v134, 0.6931472
      %v136 = vmul.f32 %v133, %v135
      %v137 = vadd.f32 %v132, %v136
      %v138 = vsub.f32 0.0, %v137
      %v139 = vsel %vm111, %v138, 0.0
      %140 = vadd.xlane.f32.xlu0 %v139
      %v141 = vpop.xlane.xlu0 %140
      %v142 = vrot.slane %v141, 4
      %v143 = vadd.f32 %v141, %v142
      %v144 = vrot.slane %v143, 2
      %v145 = vadd.f32 %v143, %v144
      %v146 = vrot.slane %v145, 1
      %v147 = vadd.f32 %v145, %v146
      %s148 = vtos %v147
      %s149 = ssub.f32 0.0, %s148
      %s150 = smul.f32 %s149, 0.055555556
      %v151 = vlaneseq
      %v152 = vand.u32 %v151, 127
      %vm153 = vcmp.eq.s32.totalorder %v152, 0
      %v154 = vstv %s127
      %v155 = vsel %vm153, %v154, 0.0
      %vm156 = vcmp.eq.s32.totalorder %v152, 1
      %v157 = vstv %s150
      %v158 = vsel %vm156, %v157, 0.0
      %v159 = vadd.f32 %v155, %v158
      %160 = vst [vmem:[%s109] sm:$0x1] %v159
      %p161 = scmp.lt.s32.totalorder %s12, 2
      %s162 = scalar_select %p161, %s12, 2
      %s163 = scalar_lea.vmem %s1, %s162
      // Predicated region
      $region25: #{hybrid_model_loss.3} parent=23 // pred_check
        %p164 = pneg %p56
      $region26: #{hybrid_model_loss.3} parent=23 // pred_check_branch
        %166 = sbr.rel (%p164) target = $region28
      $region27: #{hybrid_model_loss.3} parent=23 // pred_region
        _
      $region28: #{hybrid_model_loss.3} parent=23 // pred_fallthru
        _
    $region24: #{hybrid_model_loss.3} parent=5 // pred_fallthru
      _
    %p167 = scmp.le.s32.totalorder 2, %s7
    // Predicated region
    $region29: #{hybrid_model_loss.3} parent=5 // pred_check
      %p168 = pneg %p167
    $region30: #{hybrid_model_loss.3} parent=5 // pred_check_branch
      %170 = sbr.rel (%p168) target = $region32
    $region31: #{hybrid_model_loss.3} parent=5 // pred_region
      %s171 = ssub.s32 %s7, 2
      // Predicated region
      $region33: #{hybrid_model_loss.3} parent=31 // pred_check
        %p172 = pneg %p62
      $region34: #{hybrid_model_loss.3} parent=31 // pred_check_branch
        %174 = sbr.rel (%p172) target = $region36
      $region35: #{hybrid_model_loss.3} parent=31 // pred_region
        %p175 = scmp.lt.s32.totalorder %s13, 2
        %s176 = scalar_select %p175, %s13, 2
        %s177 = scalar_lea.vmem %s1, %s176
      $region36: #{hybrid_model_loss.3} parent=31 // pred_fallthru
        _
    $region32: #{hybrid_model_loss.3} parent=5 // pred_fallthru
      _
  $region6: #{hybrid_model_loss.3} parent=0 // loop_footer
    %s11 = sadd.s32 1, %s7
  $region7: #{hybrid_model_loss.3} parent=0 // loop_footer_branch
    %6 = sbr.rel target = $region3
  $region8: #{hybrid_model_loss.3} parent=0 // loop_exit
    _

// kernel: hybrid_model_loss.2
$region0: #{hybrid_model_loss.2}
  #allocation0 [shape = 'u32[]', space=smem, size = 0x4, offset = 0x4, fixed_abs, tag = 'smem constant byte address 0x4 - core index']
  #allocation1 [shape = 'u32[144,128]{1,0:T(1,128)}', space=vmem, size = 0x12000, scoped, tag = 'internal scratch']
  %s0 = inlined_call_operand.vmem [shape: s32[18,1], index: 0, kind: input, shape index: {}]
  %s1 = inlined_call_operand.vmem [shape: s32[18,1], index: 1, kind: input, shape index: {}]
  %s2 = inlined_call_operand.vmem [shape: f32[18,128], index: 2, kind: input, shape index: {}]
  %s3 = inlined_call_operand.vmem [shape: f32[18,128], index: 3, kind: input, shape index: {}]
  %s4 = inlined_call_operand.vmem [shape: f32[1,1,128], index: 4, kind: output, shape index: {}]
  %s5 = sld [smem:[#allocation0]]
  $region26: #{hybrid_model_loss.2} parent=0
    _
  %s7 = ssub.s32 1, %s5
  %s8 = scalar_select 0, %s7, %s5
  // Predicated region
  $region2: #{hybrid_model_loss.2} parent=0 // pred_check
    _
  $region3: #{hybrid_model_loss.2} parent=0 // pred_check_branch
    %10 = sbr.rel (0) target = $region5
  $region4: #{hybrid_model_loss.2} parent=0 // pred_region
    _
  $region5: #{hybrid_model_loss.2} parent=0 // pred_fallthru
    _
  // Predicated region
  $region6: #{hybrid_model_loss.2} parent=0 // pred_check
    _
  $region7: #{hybrid_model_loss.2} parent=0 // pred_check_branch
    %12 = sbr.rel (0) target = $region9
  $region8: #{hybrid_model_loss.2} parent=0 // pred_region
    _
  $region9: #{hybrid_model_loss.2} parent=0 // pred_fallthru
    _
  // Predicated region
  $region10: #{hybrid_model_loss.2} parent=0 // pred_check
    _
  $region11: #{hybrid_model_loss.2} parent=0 // pred_check_branch
    %14 = sbr.rel (0) target = $region13
  $region12: #{hybrid_model_loss.2} parent=0 // pred_region
    _
  $region13: #{hybrid_model_loss.2} parent=0 // pred_fallthru
    _
  // Predicated region
  $region14: #{hybrid_model_loss.2} parent=0 // pred_check
    _
  $region15: #{hybrid_model_loss.2} parent=0 // pred_check_branch
    %16 = sbr.rel (0) target = $region17
  $region16: #{hybrid_model_loss.2} parent=0 // pred_region
    _
  $region17: #{hybrid_model_loss.2} parent=0 // pred_fallthru
    _
  %s17 = smul.u32 0, 18
  %v18 = vlaneseq
  %v19 = vshrl.u32 %v18, 7
  %v20 = vadd.s32 %v19, 8
  %v21 = vadd.s32 %v19, 16
  %v22 = vstv %s17
  %v23 = vadd.s32 %v22, %v19
  %v24 = vadd.s32 %v22, %v20
  %v25 = vadd.s32 %v22, %v21
  %vm26 = vcmp.lt.s32.totalorder %v23, 18
  %vm27 = vcmp.lt.s32.totalorder %v24, 18
  %vm28 = vcmp.lt.s32.totalorder %v25, 18
  %v29 = vld [vmem:[%s0] sm:$0xff]
  %v30 = vld [vmem:[%s0 + $0x8] sm:$0xff]
  %v31 = vld [vmem:[%s0 + $0x10] sm:$0x3]
  %v32 = vld [vmem:[%s2] sm:$0xff]
  %v33 = vld [vmem:[%s2 + $0x8] sm:$0xff]
  %v34 = vld [vmem:[%s2 + $0x10] sm:$0x3]
  %35 = vmax.xlane.f32.xlu0 %v32
  %v36 = vpop.xlane.xlu0 %35
  %37 = vmax.xlane.f32.xlu0 %v33
  %v38 = vpop.xlane.xlu0 %37
  %vm39 = vcmask 1041408
  %v40 = vsel %vm39, %v34, -inf
  %41 = vmax.xlane.f32.xlu0 %v40
  %v42 = vpop.xlane.xlu0 %41
  %v43 = vsub.f32 %v32, %v36
  %v44 = vsub.f32 %v33, %v38
  %v45 = vsub.f32 %v34, %v42
  %v46 = vmul.f32 %v43, 1.442695
  %v47 = vpow.pop %v46
  %v48 = vmul.f32 %v44, 1.442695
  %v49 = vpow.pop %v48
  %v50 = vmul.f32 %v45, 1.442695
  %v51 = vpow.pop %v50
  %52 = vadd.xlane.f32.xlu0 %v47
  %v53 = vpop.xlane.xlu0 %52
  %54 = vadd.xlane.f32.xlu0 %v49
  %v55 = vpop.xlane.xlu0 %54
  %v56 = vsel %vm39, %v51, 0.0
  %57 = vadd.xlane.f32.xlu0 %v56
  %v58 = vpop.xlane.xlu0 %57
  %v59 = vlaneseq
  %v60 = vand.u32 %v59, 127
  %61 = vset.pattern.permute.xlu0 0
  %62 = vperm.xlu0 %61, %v29
  %v63 = vpop.permute.xlu0 %62
  %64 = vset.pattern.permute.xlu0 0
  %65 = vperm.xlu0 %64, %v30
  %v66 = vpop.permute.xlu0 %65
  %67 = vset.pattern.permute.xlu0 0
  %68 = vperm.xlu0 %67, %v31
  %v69 = vpop.permute.xlu0 %68
  %vm70 = vcmp.eq.s32.totalorder %v60, %v63
  %vm71 = vcmp.eq.s32.totalorder %v60, %v66
  %vm72 = vcmp.eq.s32.totalorder %v60, %v69
  %v73 = vsel %vm70, %v43, 0.0
  %v74 = vsel %vm71, %v44, 0.0
  %v75 = vsel %vm72, %v45, 0.0
  %76 = vadd.xlane.f32.xlu0 %v73
  %v77 = vpop.xlane.xlu0 %76
  %78 = vadd.xlane.f32.xlu0 %v74
  %v79 = vpop.xlane.xlu0 %78
  %v80 = vsel %vm39, %v75, 0.0
  %81 = vadd.xlane.f32.xlu0 %v80
  %v82 = vpop.xlane.xlu0 %81
  %v83 = vlog2.pop %v53
  %v84 = vmul.f32 %v83, 0.6931472
  %v85 = vlog2.pop %v55
  %v86 = vmul.f32 %v85, 0.6931472
  %v87 = vlog2.pop %v58
  %v88 = vmul.f32 %v87, 0.6931472
  %v89 = vsub.f32 %v84, %v77
  %v90 = vsub.f32 %v86, %v79
  %v91 = vsub.f32 %v88, %v82
  %vm92 = vcmp.ne.s32.totalorder %v29, 4294967196
  %vm93 = vcmp.ne.s32.totalorder %v30, 4294967196
  %vm94 = vcmp.ne.s32.totalorder %v31, 4294967196
  %vm95 = vmand %vm26, %vm92
  %vm96 = vmand %vm27, %vm93
  %vm97 = vmand %vm28, %vm94
  %v98 = vsel %vm95, %v89, 0.0
  %v99 = vsel %vm96, %v90, 0.0
  %v100 = vsel %vm97, %v91, 0.0
  %vm101 = vcmask 7168
  %v102 = vsel %vm101, %v98, 0.0
  %v103 = vsel %vm101, %v99, 0.0
  %v104 = vadd.f32 %v102, %v103
  %vm105 = vcmask 1024
  %v106 = vsel %vm105, %v100, 0.0
  %v107 = vadd.f32 %v104, %v106
  %108 = vadd.xlane.f32.xlu0 %v107
  %v109 = vpop.xlane.xlu0 %108
  %v110 = vrot.slane %v109, 4
  %v111 = vadd.f32 %v109, %v110
  %v112 = vrot.slane %v111, 2
  %v113 = vadd.f32 %v111, %v112
  %v114 = vrot.slane %v113, 1
  %v115 = vadd.f32 %v113, %v114
  %s116 = vtos %v115
  %v117 = vsel %vm95, 1, 0
  %v118 = vsel %vm96, 1, 0
  %v119 = vsel %vm97, 1, 0
  %v120 = vcvt.s32.f32 %v117
  %v121 = vcvt.s32.f32 %v118
  %v122 = vcvt.s32.f32 %v119
  %v123 = vsel %vm101, %v120, 0.0
  %v124 = vsel %vm101, %v121, 0.0
  %v125 = vadd.f32 %v123, %v124
  %v126 = vsel %vm105, %v122, 0.0
  %v127 = vadd.f32 %v125, %v126
  %128 = vadd.xlane.f32.xlu0 %v127
  %v129 = vpop.xlane.xlu0 %128
  %v130 = vrot.slane %v129, 4
  %v131 = vadd.f32 %v129, %v130
  %v132 = vrot.slane %v131, 2
  %v133 = vadd.f32 %v131, %v132
  %v134 = vrot.slane %v133, 1
  %v135 = vadd.f32 %v133, %v134
  %s136 = vtos %v135
  %v137 = vmul.f32 %v43, 0.25
  %v138 = vmul.f32 %v44, 0.25
  %v139 = vmul.f32 %v45, 0.25
  %v140 = vmul.f32 %v137, 1.442695
  %v141 = vpow.pop %v140
  %v142 = vmul.f32 %v138, 1.442695
  %v143 = vpow.pop %v142
  %v144 = vmul.f32 %v139, 1.442695
  %v145 = vpow.pop %v144
  %146 = vadd.xlane.f32.xlu0 %v141
  %v147 = vpop.xlane.xlu0 %146
  %148 = vadd.xlane.f32.xlu0 %v143
  %v149 = vpop.xlane.xlu0 %148
  %v150 = vsel %vm39, %v145, 0.0
  %151 = vadd.xlane.f32.xlu0 %v150
  %v152 = vpop.xlane.xlu0 %151
  %v153 = vld [vmem:[%s3] sm:$0xff]
  %v154 = vld [vmem:[%s3 + $0x8] sm:$0xff]
  %v155 = vld [vmem:[%s3 + $0x10] sm:$0x3]
  %v156 = vmul.f32 %v153, 0.25
  %v157 = vmul.f32 %v154, 0.25
  %v158 = vmul.f32 %v155, 0.25
  %159 = vmax.xlane.f32.xlu0 %v156
  %v160 = vpop.xlane.xlu0 %159
  %161 = vmax.xlane.f32.xlu0 %v157
  %v162 = vpop.xlane.xlu0 %161
  %v163 = vsel %vm39, %v158, -inf
  %164 = vmax.xlane.f32.xlu0 %v163
  %v165 = vpop.xlane.xlu0 %164
  %v166 = vsub.f32 %v156, %v160
  %v167 = vsub.f32 %v157, %v162
  %v168 = vsub.f32 %v158, %v165
  %v169 = vmul.f32 %v166, 1.442695
  %v170 = vpow.pop %v169
  %v171 = vmul.f32 %v167, 1.442695
  %v172 = vpow.pop %v171
  %v173 = vmul.f32 %v168, 1.442695
  %v174 = vpow.pop %v173
  %175 = vadd.xlane.f32.xlu0 %v170
  %v176 = vpop.xlane.xlu0 %175
  %177 = vadd.xlane.f32.xlu0 %v172
  %v178 = vpop.xlane.xlu0 %177
  %v179 = vsel %vm39, %v174, 0.0
  %180 = vadd.xlane.f32.xlu0 %v179
  %v181 = vpop.xlane.xlu0 %180
  %v182 = vsub.f32 %v166, %v137
  %v183 = vsub.f32 %v167, %v138
  %v184 = vsub.f32 %v168, %v139
  %v185 = vmul.f32 %v170, %v182
  %v186 = vmul.f32 %v172, %v183
  %v187 = vmul.f32 %v174, %v184
  %188 = vadd.xlane.f32.xlu0 %v185
  %v189 = vpop.xlane.xlu0 %188
  %190 = vadd.xlane.f32.xlu0 %v186
  %v191 = vpop.xlane.xlu0 %190
  %v192 = vsel %vm39, %v187, 0.0
  %193 = vadd.xlane.f32.xlu0 %v192
  %v194 = vpop.xlane.xlu0 %193
  %v195 = vrcp.pop %v176
  %v196 = vmul.f32 %v189, %v195
  %v197 = vrcp.pop %v178
  %v198 = vmul.f32 %v191, %v197
  %v199 = vrcp.pop %v181
  %v200 = vmul.f32 %v194, %v199
  %v201 = vlog2.pop %v147
  %v202 = vmul.f32 %v201, 0.6931472
  %v203 = vlog2.pop %v149
  %v204 = vmul.f32 %v203, 0.6931472
  %v205 = vlog2.pop %v152
  %v206 = vmul.f32 %v205, 0.6931472
  %v207 = vadd.f32 %v196, %v202
  %v208 = vadd.f32 %v198, %v204
  %v209 = vadd.f32 %v200, %v206
  %v210 = vlog2.pop %v176
  %v211 = vmul.f32 %v210, 0.6931472
  %v212 = vlog2.pop %v178
  %v213 = vmul.f32 %v212, 0.6931472
  %v214 = vlog2.pop %v181
  %v215 = vmul.f32 %v214, 0.6931472
  %v216 = vsub.f32 %v207, %v211
  %v217 = vsub.f32 %v208, %v213
  %v218 = vsub.f32 %v209, %v215
  %v219 = vld [vmem:[%s1] sm:$0xff]
  %v220 = vld [vmem:[%s1 + $0x8] sm:$0xff]
  %v221 = vld [vmem:[%s1 + $0x10] sm:$0x3]
  %vm222 = vcmp.gt.s32.totalorder %v219, 0
  %vm223 = vcmp.gt.s32.totalorder %v220, 0
  %vm224 = vcmp.gt.s32.totalorder %v221, 0
  %vm225 = vmand %vm26, %vm222
  %vm226 = vmand %vm27, %vm223
  %vm227 = vmand %vm28, %vm224
  %v228 = vsel %vm225, %v216, 0.0
  %v229 = vsel %vm226, %v217, 0.0
  %v230 = vsel %vm227, %v218, 0.0
  %v231 = vsel %vm101, %v228, 0.0
  %v232 = vsel %vm101, %v229, 0.0
  %v233 = vadd.f32 %v231, %v232
  %v234 = vsel %vm105, %v230, 0.0
  %v235 = vadd.f32 %v233, %v234
  %236 = vadd.xlane.f32.xlu0 %v235
  %v237 = vpop.xlane.xlu0 %236
  %v238 = vrot.slane %v237, 4
  %v239 = vadd.f32 %v237, %v238
  %v240 = vrot.slane %v239, 2
  %v241 = vadd.f32 %v239, %v240
  %v242 = vrot.slane %v241, 1
  %v243 = vadd.f32 %v241, %v242
  %s244 = vtos %v243
  %vm245 = vcmp.eq.s32.totalorder %v60, 0
  %v246 = vstv %s116
  %v247 = vsel %vm245, %v246, 0.0
  %vm248 = vcmp.eq.s32.totalorder %v60, 1
  %v249 = vstv %s136
  %v250 = vsel %vm248, %v249, 0.0
  %v251 = vadd.f32 %v247, %v250
  %vm252 = vcmp.eq.s32.totalorder %v60, 2
  %v253 = vstv %s244
  %v254 = vsel %vm252, %v253, 0.0
  %v255 = vadd.f32 %v251, %v254
  %256 = vst [vmem:[%s4] sm:$0x1] %v255
  // Predicated region
  $region18: #{hybrid_model_loss.2} parent=0 // pred_check
    _
  $region19: #{hybrid_model_loss.2} parent=0 // pred_check_branch
    %258 = sbr.rel (0) target = $region21
  $region20: #{hybrid_model_loss.2} parent=0 // pred_region
    _
  $region21: #{hybrid_model_loss.2} parent=0 // pred_fallthru
    _
  // Predicated region
  $region22: #{hybrid_model_loss.2} parent=0 // pred_check
    _
  $region23: #{hybrid_model_loss.2} parent=0 // pred_check_branch
    %260 = sbr.rel (0) target = $region25
  $region24: #{hybrid_model_loss.2} parent=0 // pred_region
    _
  $region25: #{hybrid_model_loss.2} parent=0 // pred_fallthru
    _

</llo_original>
